<compile_context>
chip_gen: v7x
topology: tpu7x:2x2x1
jax: 0.10.0
libtpu: 0.0.40
codegen_flags: <defaults>
</compile_context>

<pallas_src>
import functools

import jax
import jax.numpy as jnp
import numpy as np
from jax.experimental import pallas as pl
from jax.experimental.pallas import tpu as pltpu


def _elr_kernel(out_ref, ema_ref, new_ema_ref, logterm_ref, *, beta):
    # Layout: (TB, C) — batch rows on sublanes, class (softmax) axis on lanes.
    x = out_ref[...].astype(jnp.float32)                         # logits tile

    # Numerically stable softmax over the class axis, normalized via a single
    # per-row reciprocal (EUP/exact) + broadcast multiply instead of a divide.
    x_max = jnp.max(x, axis=1, keepdims=True)
    e = jnp.exp(x - x_max)
    inv_se = pl.reciprocal(jnp.sum(e, axis=1, keepdims=True))    # approx=True ok if loose parity
    y_pred = jnp.clip(e * inv_se, 0.0001, 1.0 - 0.0001)

    # Detached, re-normalized copy (identical forward values).
    inv_tot = pl.reciprocal(jnp.sum(y_pred, axis=1, keepdims=True))
    y_norm = y_pred * inv_tot

    # EMA blend:  ema[index] = beta * ema[index] + (1 - beta) * y_norm
    new_ema = beta * ema_ref[...].astype(jnp.float32) + (1.0 - beta) * y_norm
    new_ema_ref[...] = new_ema.astype(new_ema_ref.dtype)

    # Per-row regularizer term: log(1 - sum(new_ema * y_pred, axis=1)).
    dot = jnp.sum(new_ema * y_pred, axis=1, keepdims=True)       # (TB, 1)
    logterm_ref[...] = jnp.log1p(-dot)


def _pick_block_rows(batch, width, itemsize=4, vmem_budget_bytes=8 * 1024 * 1024):
    """Largest multiple-of-8 divisor of `batch` (capped) whose double-buffered
    working set (~3 (TB, C) f32 tiles x 2 buffers) fits a conservative budget
    that is safe on every generation's default scoped VMEM (v5e: 16 MiB)."""
    if batch % 8 != 0:
        return batch                                  # single full-array block
    per_row = 3 * 2 * width * itemsize
    tb = min(batch, 512, max(8, (vmem_budget_bytes // per_row) // 8 * 8))
    while batch % tb != 0:
        tb -= 8
    return tb


@functools.partial(jax.jit,
                   static_argnames=("beta", "lamb", "block_rows"),
                   donate_argnums=(2,))                # donate ema -> in-place scatter
def elr_loss_forward(index, outputs, ema, *, beta, lamb, block_rows=None):
    """Returns (scalar loss, updated ema buffer)."""
    B, C = outputs.shape
    tb = block_rows if block_rows is not None else _pick_block_rows(B, C)
    if B % tb != 0 or (tb % 8 != 0 and tb != B):
        tb = _pick_block_rows(B, C)
    grid = (B // tb,)

    # Row gather (glue). No dtype upcast here — the kernel casts internally.
    ema_rows = ema[index]

    kernel = functools.partial(_elr_kernel, beta=float(beta))
    new_rows, log_terms = pl.pallas_call(
        kernel,
        grid=grid,
        in_specs=[
            pl.BlockSpec((tb, C), lambda i: (i, 0)),             # logits tile
            pl.BlockSpec((tb, C), lambda i: (i, 0)),             # gathered ema rows
        ],
        out_specs=(
            pl.BlockSpec((tb, C), lambda i: (i, 0)),             # updated ema rows
            pl.BlockSpec((tb, 1), lambda i: (i, 0)),             # per-row log terms
        ),
        out_shape=(
            jax.ShapeDtypeStruct((B, C), ema.dtype),
            jax.ShapeDtypeStruct((B, 1), jnp.float32),
        ),
        compiler_params=pltpu.CompilerParams(
            dimension_semantics=("parallel",)),
    )(outputs, ema_rows)

    # Row scatter; with the donated buffer XLA updates ema in place (no full copy).
    new_ema = ema.at[index].set(new_rows.astype(ema.dtype))
    loss = lamb * jnp.mean(log_terms)
    return loss, new_ema


def elr_loss_reference(index, outputs, ema, *, beta, lamb):
    """Pure-JAX reference mirroring the PyTorch module."""
    y_pred = jax.nn.softmax(outputs.astype(jnp.float32), axis=1)
    y_pred = jnp.clip(y_pred, 0.0001, 1.0 - 0.0001)
    y_norm = y_pred / jnp.sum(y_pred, axis=1, keepdims=True)
    new_rows = beta * ema[index].astype(jnp.float32) + (1.0 - beta) * y_norm
    new_ema = ema.at[index].set(new_rows.astype(ema.dtype))
    elr_reg = jnp.mean(jnp.log(1.0 - jnp.sum(new_rows * y_pred, axis=1)))
    return lamb * elr_reg, new_ema


if __name__ == "__main__":
    # Hyperparameters (Office-Home-like: 65 classes).
    beta, lamb = 0.6, 0.3
    num, cls = 256, 65                 # EMA buffer (num, cls), initialized to zeros
    batch = 64

    key = jax.random.PRNGKey(0)
    k_out, k_idx, k_out2 = jax.random.split(key, 3)

    outputs1 = jax.random.normal(k_out, (batch, cls), dtype=jnp.float32)
    outputs2 = jax.random.normal(k_out2, (batch, cls), dtype=jnp.float32)
    index = jax.random.permutation(k_idx, num)[:batch]           # unique indices

    # Separate EMA buffers for the kernel path (donated / mutated in place) and
    # the reference path.
    ema_k = jnp.zeros((num, cls), dtype=jnp.float32)
    ema_r = jnp.zeros((num, cls), dtype=jnp.float32)

    # block_rows=16 forces grid=(4,) so the tiled/pipelined path is exercised
    # even at demo-sized shapes (production default auto-sizes the tile).
    loss1, ema_k = elr_loss_forward(index, outputs1, ema_k,
                                    beta=beta, lamb=lamb, block_rows=16)
    ref1, ema_r = elr_loss_reference(index, outputs1, ema_r, beta=beta, lamb=lamb)
    ema_k1_np = np.asarray(ema_k)       # materialize before step-2 donation

    loss2, ema_k = elr_loss_forward(index, outputs2, ema_k,
                                    beta=beta, lamb=lamb, block_rows=16)
    ref2, ema_r = elr_loss_reference(index, outputs2, ema_r, beta=beta, lamb=lamb)

    jax.block_until_ready((loss1, loss2, ema_k))

    np.testing.assert_allclose(np.asarray(loss1), np.asarray(ref1), rtol=1e-4, atol=1e-6)
    np.testing.assert_allclose(ema_k1_np, np.asarray(elr_loss_reference(
        index, outputs1, jnp.zeros((num, cls), jnp.float32), beta=beta, lamb=lamb)[1]),
        rtol=1e-4, atol=1e-6)
    np.testing.assert_allclose(np.asarray(loss2), np.asarray(ref2), rtol=1e-4, atol=1e-6)
    np.testing.assert_allclose(np.asarray(ema_k), np.asarray(ema_r), rtol=1e-4, atol=1e-6)

    # TODO(synk): .detach() only matters for backward; a custom VJP must stop
    # gradients through the EMA-blend branch if training end-to-end.
    print("KERNEL_OK")
</pallas_src>

<mosaic_0001>
module attributes {stable_mosaic.version = 11 : i64} {
  func.func @_elr_kernel(%arg0: i32, %arg1: memref<16x65xf32, #tpu.memory_space<vmem>>, %arg2: memref<16x65xf32, #tpu.memory_space<vmem>>, %arg3: memref<16x65xf32, #tpu.memory_space<vmem>>, %arg4: memref<16x1xf32, #tpu.memory_space<vmem>>) attributes {dimension_semantics = [#tpu.dimension_semantics<parallel>], iteration_bounds = array<i64: 4>, scalar_prefetch = 0 : i64, scratch_operands = 0 : i64, tpu.core_type = #tpu.core_type<tc>, window_params = [{transform_indices = @transform_0, window_bounds = array<i64: 16, 65>}, {transform_indices = @transform_1, window_bounds = array<i64: 16, 65>}, {transform_indices = @transform_2, window_bounds = array<i64: 16, 65>}, {transform_indices = @transform_3, window_bounds = array<i64: 16, 1>}]} {
    %c0 = arith.constant 0 : index
    %c0_0 = arith.constant 0 : index
    %0 = vector.load %arg1[%c0, %c0_0] : memref<16x65xf32, #tpu.memory_space<vmem>>, vector<16x65xf32>
    %cst = arith.constant dense<0xFF800000> : vector<16xf32>
    %1 = vector.multi_reduction <maximumf>, %0, %cst [1] : vector<16x65xf32> to vector<16xf32>
    %2 = vector.shape_cast %1 : vector<16xf32> to vector<16x1xf32>
    %3 = vector.broadcast %2 : vector<16x1xf32> to vector<16x65xf32>
    %4 = arith.subf %0, %3 : vector<16x65xf32>
    %5 = math.exp %4 : vector<16x65xf32>
    %cst_1 = arith.constant dense<0.000000e+00> : vector<16xf32>
    %6 = vector.multi_reduction <add>, %5, %cst_1 [1] : vector<16x65xf32> to vector<16xf32>
    %7 = vector.shape_cast %6 : vector<16xf32> to vector<16x1xf32>
    %8 = tpu.reciprocal %7 : vector<16x1xf32> -> vector<16x1xf32>
    %9 = vector.broadcast %8 : vector<16x1xf32> to vector<16x65xf32>
    %10 = arith.mulf %5, %9 : vector<16x65xf32>
    %cst_2 = arith.constant 9.99999974E-5 : f32
    %cst_3 = arith.constant 0.999899983 : f32
    %11 = vector.broadcast %cst_2 : f32 to vector<16x65xf32>
    %12 = arith.maximumf %11, %10 : vector<16x65xf32>
    %13 = vector.broadcast %cst_3 : f32 to vector<16x65xf32>
    %14 = arith.minimumf %13, %12 : vector<16x65xf32>
    %cst_4 = arith.constant dense<0.000000e+00> : vector<16xf32>
    %15 = vector.multi_reduction <add>, %14, %cst_4 [1] : vector<16x65xf32> to vector<16xf32>
    %16 = vector.shape_cast %15 : vector<16xf32> to vector<16x1xf32>
    %17 = tpu.reciprocal %16 : vector<16x1xf32> -> vector<16x1xf32>
    %18 = vector.broadcast %17 : vector<16x1xf32> to vector<16x65xf32>
    %19 = arith.mulf %14, %18 : vector<16x65xf32>
    %c0_5 = arith.constant 0 : index
    %c0_6 = arith.constant 0 : index
    %20 = vector.load %arg2[%c0_5, %c0_6] : memref<16x65xf32, #tpu.memory_space<vmem>>, vector<16x65xf32>
    %cst_7 = arith.constant 6.000000e-01 : f32
    %21 = vector.broadcast %cst_7 : f32 to vector<16x65xf32>
    %22 = arith.mulf %21, %20 : vector<16x65xf32>
    %cst_8 = arith.constant 4.000000e-01 : f32
    %23 = vector.broadcast %cst_8 : f32 to vector<16x65xf32>
    %24 = arith.mulf %23, %19 : vector<16x65xf32>
    %25 = arith.addf %22, %24 : vector<16x65xf32>
    %c0_9 = arith.constant 0 : index
    %c0_10 = arith.constant 0 : index
    %26 = vector.load %arg3[%c0_9, %c0_10] : memref<16x65xf32, #tpu.memory_space<vmem>>, vector<16x65xf32>
    tpu.vector_store %arg3[%c0_9, %c0_10], %25 {strides = array<i32>} : memref<16x65xf32, #tpu.memory_space<vmem>>, vector<16x65xf32>,
    %27 = arith.mulf %25, %14 : vector<16x65xf32>
    %cst_11 = arith.constant dense<0.000000e+00> : vector<16xf32>
    %28 = vector.multi_reduction <add>, %27, %cst_11 [1] : vector<16x65xf32> to vector<16xf32>
    %29 = vector.shape_cast %28 : vector<16xf32> to vector<16x1xf32>
    %cst_12 = arith.constant 0.000000e+00 : f32
    %30 = vector.broadcast %cst_12 : f32 to vector<16x1xf32>
    %31 = arith.subf %30, %29 : vector<16x1xf32>
    %32 = math.log1p %31 : vector<16x1xf32>
    %c0_13 = arith.constant 0 : index
    %c0_14 = arith.constant 0 : index
    %33 = vector.load %arg4[%c0_13, %c0_14] : memref<16x1xf32, #tpu.memory_space<vmem>>, vector<16x1xf32>
    tpu.vector_store %arg4[%c0_13, %c0_14], %32 {strides = array<i32>} : memref<16x1xf32, #tpu.memory_space<vmem>>, vector<16x1xf32>,
    return
  }
  func.func @transform_0(%arg0: i32) -> (i32, i32) {
    %c0_i32 = arith.constant 0 : i32
    %c0_i32_0 = arith.constant 0 : i32
    return %arg0, %c0_i32 : i32, i32
  }
  func.func @transform_1(%arg0: i32) -> (i32, i32) {
    %c0_i32 = arith.constant 0 : i32
    %c0_i32_0 = arith.constant 0 : i32
    return %arg0, %c0_i32 : i32, i32
  }
  func.func @transform_2(%arg0: i32) -> (i32, i32) {
    %c0_i32 = arith.constant 0 : i32
    %c0_i32_0 = arith.constant 0 : i32
    return %arg0, %c0_i32 : i32, i32
  }
  func.func @transform_3(%arg0: i32) -> (i32, i32) {
    %c0_i32 = arith.constant 0 : i32
    %c0_i32_0 = arith.constant 0 : i32
    return %arg0, %c0_i32 : i32, i32
  }
}

</mosaic_0001>

<llo_original>
// kernel: elr_loss_forward.1
$region0: #{elr_loss_forward.1}
  #allocation0 [shape = 'u32[]', space=smem, size = 0x4, offset = 0x4, fixed_abs, tag = 'smem constant byte address 0x4 - core index']
  #allocation1 [shape = 'u32[144,128]{1,0:T(1,128)}', space=vmem, size = 0x12000, scoped, tag = 'internal scratch']
  %s0 = inlined_call_operand.vmem [shape: f32[64,65], index: 0, kind: input, shape index: {}]
  %s1 = inlined_call_operand.vmem [shape: f32[64,65], index: 1, kind: input, shape index: {}]
  %s2 = inlined_call_operand.vmem [shape: f32[64,65], index: 2, kind: output, shape index: {0}]
  %s3 = inlined_call_operand.vmem [shape: f32[64,1], index: 3, kind: output, shape index: {1}]
  %4 = xla_tuple %s2, %s3
  %s5 = sld [smem:[#allocation0]]
  $region49: #{elr_loss_forward.1} parent=0
    _
  %s7 = ssub.s32 1, %s5
  %s8 = scalar_select 0, %s7, %s5
  loop: start=0, step=1, limit=6
  $region2: #{elr_loss_forward.1} parent=0 // loop_pre_header
    _
  $region3: #{elr_loss_forward.1} parent=0 // loop_header
    %s10 = sphi 0, %s14
    %p11 = scmp.ge.s32.totalorder %s10, 6
    %s20 = sphi 0, %s22
    %s23 = sphi 0, %s20
    %s24 = sphi 0, %s23
    %s40 = sphi 0, %s24
    %s46 = sphi 0, %s48
    %s49 = sphi 0, %s46
    %s50 = sphi 0, %s49
    %s66 = sphi 0, %s50
    %s72 = sphi 0, %s74
    %s75 = sphi 0, %s72
    %s76 = sphi 0, %s75
    %s92 = sphi 0, %s76
    %s98 = sphi 0, %s100
    %s101 = sphi 0, %s98
    %s102 = sphi 0, %s101
    %s118 = sphi 0, %s102
  $region4: #{elr_loss_forward.1} parent=0 // loop_header_branch
    %13 = sbr.rel (%p11) target = $region8
  $region5: #{elr_loss_forward.1} parent=0 // loop_body
    %s15 = ssub.s32 %s10, 1
    %s16 = ssub.s32 %s10, 2
    %s17 = sadd.s32 %s10, 1
    %s18 = ssub.s32 %s10, %s17
    %p19 = scmp.eq.s32.totalorder %s18, 0
    %s21 = sadd.s32 %s20, 1
    %s22 = scalar_select %p19, %s20, %s21
    %p25 = pneg %p19
    %p26 = scmp.eq.s32.totalorder %s10, 3
    %p27 = por %p25, %p26
    %p28 = scmp.ne.s32.totalorder %s20, %s23
    %p29 = scmp.eq.s32.totalorder %s10, 0
    %p30 = por %p28, %p29
    %p31 = scmp.ne.s32.totalorder %s20, %s23
    %p32 = scmp.eq.s32.totalorder %s15, 3
    %p33 = por %p31, %p32
    %p34 = scmp.ne.s32.totalorder %s23, %s24
    %p35 = scmp.eq.s32.totalorder %s15, 0
    %p36 = por %p34, %p35
    %p37 = scmp.ne.s32.totalorder %s23, %s24
    %p38 = scmp.eq.s32.totalorder %s16, 3
    %p39 = por %p37, %p38
    %p41 = scmp.ne.s32.totalorder %s24, %s40
    %p42 = scmp.eq.s32.totalorder %s16, 0
    %p43 = por %p41, %p42
    %s44 = ssub.s32 %s10, %s17
    %p45 = scmp.eq.s32.totalorder %s44, 0
    %s47 = sadd.s32 %s46, 1
    %s48 = scalar_select %p45, %s46, %s47
    %p51 = pneg %p45
    %p52 = scmp.eq.s32.totalorder %s10, 3
    %p53 = por %p51, %p52
    %p54 = scmp.ne.s32.totalorder %s46, %s49
    %p55 = scmp.eq.s32.totalorder %s10, 0
    %p56 = por %p54, %p55
    %p57 = scmp.ne.s32.totalorder %s46, %s49
    %p58 = scmp.eq.s32.totalorder %s15, 3
    %p59 = por %p57, %p58
    %p60 = scmp.ne.s32.totalorder %s49, %s50
    %p61 = scmp.eq.s32.totalorder %s15, 0
    %p62 = por %p60, %p61
    %p63 = scmp.ne.s32.totalorder %s49, %s50
    %p64 = scmp.eq.s32.totalorder %s16, 3
    %p65 = por %p63, %p64
    %p67 = scmp.ne.s32.totalorder %s50, %s66
    %p68 = scmp.eq.s32.totalorder %s16, 0
    %p69 = por %p67, %p68
    %s70 = ssub.s32 %s10, %s17
    %p71 = scmp.eq.s32.totalorder %s70, 0
    %s73 = sadd.s32 %s72, 1
    %s74 = scalar_select %p71, %s72, %s73
    %p77 = pneg %p71
    %p78 = scmp.eq.s32.totalorder %s10, 3
    %p79 = por %p77, %p78
    %p80 = scmp.ne.s32.totalorder %s72, %s75
    %p81 = scmp.eq.s32.totalorder %s10, 0
    %p82 = por %p80, %p81
    %p83 = scmp.ne.s32.totalorder %s72, %s75
    %p84 = scmp.eq.s32.totalorder %s15, 3
    %p85 = por %p83, %p84
    %p86 = scmp.ne.s32.totalorder %s75, %s76
    %p87 = scmp.eq.s32.totalorder %s15, 0
    %p88 = por %p86, %p87
    %p89 = scmp.ne.s32.totalorder %s75, %s76
    %p90 = scmp.eq.s32.totalorder %s16, 3
    %p91 = por %p89, %p90
    %p93 = scmp.ne.s32.totalorder %s76, %s92
    %p94 = scmp.eq.s32.totalorder %s16, 0
    %p95 = por %p93, %p94
    %s96 = ssub.s32 %s10, %s17
    %p97 = scmp.eq.s32.totalorder %s96, 0
    %s99 = sadd.s32 %s98, 1
    %s100 = scalar_select %p97, %s98, %s99
    %p103 = pneg %p97
    %p104 = scmp.eq.s32.totalorder %s10, 3
    %p105 = por %p103, %p104
    %p106 = scmp.ne.s32.totalorder %s98, %s101
    %p107 = scmp.eq.s32.totalorder %s10, 0
    %p108 = por %p106, %p107
    %p109 = scmp.ne.s32.totalorder %s98, %s101
    %p110 = scmp.eq.s32.totalorder %s15, 3
    %p111 = por %p109, %p110
    %p112 = scmp.ne.s32.totalorder %s101, %s102
    %p113 = scmp.eq.s32.totalorder %s15, 0
    %p114 = por %p112, %p113
    %p115 = scmp.ne.s32.totalorder %s101, %s102
    %p116 = scmp.eq.s32.totalorder %s16, 3
    %p117 = por %p115, %p116
    %p119 = scmp.ne.s32.totalorder %s102, %s118
    %p120 = scmp.eq.s32.totalorder %s16, 0
    %p121 = por %p119, %p120
    %p122 = scmp.le.s32.totalorder 1, %s10
    %p123 = scmp.lt.s32.totalorder %s10, 5
    %p124 = pnand %p122, %p123
    %p125 = pneg %p124
    // Predicated region
    $region9: #{elr_loss_forward.1} parent=5 // pred_check
      _
    $region10: #{elr_loss_forward.1} parent=5 // pred_check_branch
      %127 = sbr.rel (%p124) target = $region12
    $region11: #{elr_loss_forward.1} parent=5 // pred_region
      %s128 = ssub.s32 %s10, 1
    $region12: #{elr_loss_forward.1} parent=5 // pred_fallthru
      _
    %p129 = scmp.lt.s32.totalorder %s10, 4
    // Predicated region
    $region13: #{elr_loss_forward.1} parent=5 // pred_check
      %p130 = pneg %p129
    $region14: #{elr_loss_forward.1} parent=5 // pred_check_branch
      %132 = sbr.rel (%p130) target = $region16
    $region15: #{elr_loss_forward.1} parent=5 // pred_region
      // Predicated region
      $region17: #{elr_loss_forward.1} parent=15 // pred_check
        %p133 = pneg %p30
      $region18: #{elr_loss_forward.1} parent=15 // pred_check_branch
        %135 = sbr.rel (%p133) target = $region20
      $region19: #{elr_loss_forward.1} parent=15 // pred_region
        %s136 = smul.u32 2, %s10
        %p137 = scmp.lt.s32.totalorder %s136, 7
        %s138 = scalar_select %p137, %s136, 7
        %s139 = smul.addr %s138, 8
        %s140 = scalar_lea.vmem %s0, %s139
        %s141 = smul.u32 2, %s10
      $region20: #{elr_loss_forward.1} parent=15 // pred_fallthru
        _
      // Predicated region
      $region21: #{elr_loss_forward.1} parent=15 // pred_check
        %p142 = pneg %p56
      $region22: #{elr_loss_forward.1} parent=15 // pred_check_branch
        %144 = sbr.rel (%p142) target = $region24
      $region23: #{elr_loss_forward.1} parent=15 // pred_region
        %s145 = smul.u32 2, %s10
        %p146 = scmp.lt.s32.totalorder %s145, 7
        %s147 = scalar_select %p146, %s145, 7
        %s148 = smul.addr %s147, 8
        %s149 = scalar_lea.vmem %s1, %s148
        %s150 = smul.u32 2, %s10
      $region24: #{elr_loss_forward.1} parent=15 // pred_fallthru
        _
    $region16: #{elr_loss_forward.1} parent=5 // pred_fallthru
      _
    %p151 = scmp.le.s32.totalorder 1, %s10
    %p152 = scmp.lt.s32.totalorder %s10, 5
    %p153 = pnand %p151, %p152
    %p154 = pneg %p153
    // Predicated region
    $region25: #{elr_loss_forward.1} parent=5 // pred_check
      _
    $region26: #{elr_loss_forward.1} parent=5 // pred_check_branch
      %156 = sbr.rel (%p153) target = $region28
    $region27: #{elr_loss_forward.1} parent=5 // pred_region
      %s157 = ssub.s32 %s10, 1
      %s158 = smul.u32 2, %s15
      %p159 = scmp.lt.s32.totalorder %s158, 7
      %s160 = scalar_select %p159, %s158, 7
      %s161 = smul.addr %s160, 8
      %s162 = scalar_lea.vmem %s0, %s161
      %p163 = pneg %p36
      %p164 = pneg %p33
      %s165 = smul.u32 2, %s15
      %p166 = scmp.lt.s32.totalorder %s165, 7
      %s167 = scalar_select %p166, %s165, 7
      %s168 = smul.addr %s167, 8
      %s169 = scalar_lea.vmem %s1, %s168
      %p170 = pneg %p62
      %p171 = pneg %p59
      %p172 = pneg %p88
      %p173 = pneg %p85
      %s174 = smul.u32 2, %s15
      %p175 = scmp.lt.s32.totalorder %s174, 7
      %s176 = scalar_select %p175, %s174, 7
      %s177 = smul.addr %s176, 8
      %s178 = scalar_lea.vmem %s2, %s177
      %p179 = pneg %p114
      %p180 = pneg %p111
      %s181 = smul.u32 2, %s15
      %p182 = scmp.lt.s32.totalorder %s181, 7
      %s183 = scalar_select %p182, %s181, 7
      %s184 = smul.addr %s183, 8
      %s185 = scalar_lea.vmem %s3, %s184
      %s186 = smul.u32 2, %s15
      %p187 = scmp.lt.s32.totalorder %s186, 7
      %s188 = scalar_select %p187, %s186, 7
      %s189 = smul.addr %s188, 8
      %s190 = scalar_lea.vmem %s0, %s189
      %s191 = smul.u32 2, %s15
      %s192 = smul.u32 2, %s15
      %p193 = scmp.lt.s32.totalorder %s192, 7
      %s194 = scalar_select %p193, %s192, 7
      %s195 = smul.addr %s194, 8
      %s196 = scalar_lea.vmem %s1, %s195
      %s197 = smul.u32 2, %s15
      %s198 = smul.u32 2, %s15
      %p199 = scmp.lt.s32.totalorder %s198, 7
      %s200 = scalar_select %p199, %s198, 7
      %s201 = smul.addr %s200, 8
      %s202 = scalar_lea.vmem %s2, %s201
      %s203 = smul.u32 2, %s15
      %s204 = smul.u32 2, %s15
      %p205 = scmp.lt.s32.totalorder %s204, 7
      %s206 = scalar_select %p205, %s204, 7
      %s207 = smul.addr %s206, 8
      %s208 = scalar_lea.vmem %s3, %s207
      %s209 = smul.u32 2, %s15
      %v210 = vld [vmem:[%s190] sm:$0xff]
      %v211 = vld [vmem:[%s190 + $0x8] sm:$0xff]
      %vm212 = vcmask 531456
      %v213 = vsel %vm212, %v210, -inf
      %214 = vmax.xlane.f32.xlu0 %v213
      %v215 = vpop.xlane.xlu0 %214
      %v216 = vsel %vm212, %v211, -inf
      %217 = vmax.xlane.f32.xlu0 %v216
      %v218 = vpop.xlane.xlu0 %217
      %v219 = vsub.f32 %v210, %v215
      %v220 = vsub.f32 %v211, %v218
      %v221 = vmul.f32 %v219, 1.442695
      %v222 = vpow.pop %v221
      %v223 = vmul.f32 %v220, 1.442695
      %v224 = vpow.pop %v223
      %v225 = vsel %vm212, %v222, 0.0
      %226 = vadd.xlane.f32.xlu0 %v225
      %v227 = vpop.xlane.xlu0 %226
      %v228 = vsel %vm212, %v224, 0.0
      %229 = vadd.xlane.f32.xlu0 %v228
      %v230 = vpop.xlane.xlu0 %229
      %v231 = vrcp.pop %v227
      %v232 = vrcp.pop %v230
      %v233 = vmul.f32 %v222, %v231
      %v234 = vmul.f32 %v224, %v232
      %v235 = vmax.f32 %v233, 0.0001
      %v236 = vmax.f32 %v234, 0.0001
      %v237 = vmin.f32 %v235, 0.9999
      %v238 = vmin.f32 %v236, 0.9999
      %v239 = vsel %vm212, %v237, 0.0
      %240 = vadd.xlane.f32.xlu0 %v239
      %v241 = vpop.xlane.xlu0 %240
      %v242 = vsel %vm212, %v238, 0.0
      %243 = vadd.xlane.f32.xlu0 %v242
      %v244 = vpop.xlane.xlu0 %243
      %v245 = vrcp.pop %v241
      %v246 = vrcp.pop %v244
      %v247 = vmul.f32 %v237, %v245
      %v248 = vmul.f32 %v238, %v246
      %v249 = vld [vmem:[%s196] sm:$0xff]
      %v250 = vld [vmem:[%s196 + $0x8] sm:$0xff]
      %v251 = vmul.f32 %v249, 0.6
      %v252 = vmul.f32 %v250, 0.6
      %v253 = vmul.f32 %v247, 0.4
      %v254 = vmul.f32 %v248, 0.4
      %v255 = vadd.f32 %v251, %v253
      %v256 = vadd.f32 %v252, %v254
      %257 = vst.msk [vmem:[%s202] sm:$0xff] %vm212, %v255
      %258 = vst.msk [vmem:[%s202 + $0x8] sm:$0xff] %vm212, %v256
      %v259 = vmul.f32 %v255, %v237
      %v260 = vmul.f32 %v256, %v238
      %v261 = vsel %vm212, %v259, 0.0
      %262 = vadd.xlane.f32.xlu0 %v261
      %v263 = vpop.xlane.xlu0 %262
      %v264 = vsel %vm212, %v260, 0.0
      %265 = vadd.xlane.f32.xlu0 %v264
      %v266 = vpop.xlane.xlu0 %265
      %v267 = vsub.f32 0.0, %v263
      %v268 = vsub.f32 0.0, %v266
      %v269 = vadd.f32 %v267, 1.0
      %v270 = vlog2.pop %v269
      %v271 = vmul.f32 %v270, 0.6931472
      %v272 = vmul.f32 -0.5, %v267
      %v273 = vadd.f32 %v272, 1.0
      %v274 = vmul.f32 %v273, %v267
      %v275 = vand.u32 2147483647, %v267
      %vm276 = vcmp.lt.f32.partialorder %v275, 0.0004427343
      %v277 = vsel %vm276, %v274, %v271
      %v278 = vadd.f32 %v268, 1.0
      %v279 = vlog2.pop %v278
      %v280 = vmul.f32 %v279, 0.6931472
      %v281 = vmul.f32 -0.5, %v268
      %v282 = vadd.f32 %v281, 1.0
      %v283 = vmul.f32 %v282, %v268
      %v284 = vand.u32 2147483647, %v268
      %vm285 = vcmp.lt.f32.partialorder %v284, 0.0004427343
      %v286 = vsel %vm285, %v283, %v280
      %vm287 = vcmask 7168
      %288 = vst.msk [vmem:[%s208] sm:$0xff] %vm287, %v277
      %289 = vst.msk [vmem:[%s208 + $0x8] sm:$0xff] %vm287, %v286
      %s290 = smul.u32 2, %s15
      %p291 = scmp.lt.s32.totalorder %s290, 7
      %s292 = scalar_select %p291, %s290, 7
      %s293 = smul.addr %s292, 8
      %s294 = scalar_lea.vmem %s2, %s293
      %s295 = smul.u32 2, %s15
      %p296 = scmp.lt.s32.totalorder %s295, 7
      %s297 = scalar_select %p296, %s295, 7
      %s298 = smul.addr %s297, 8
      %s299 = scalar_lea.vmem %s3, %s298
      // Predicated region
      $region29: #{elr_loss_forward.1} parent=27 // pred_check
        %p300 = pneg %p85
      $region30: #{elr_loss_forward.1} parent=27 // pred_check_branch
        %302 = sbr.rel (%p300) target = $region32
      $region31: #{elr_loss_forward.1} parent=27 // pred_region
        %s303 = smul.u32 2, %s15
      $region32: #{elr_loss_forward.1} parent=27 // pred_fallthru
        _
      // Predicated region
      $region33: #{elr_loss_forward.1} parent=27 // pred_check
        %p304 = pneg %p111
      $region34: #{elr_loss_forward.1} parent=27 // pred_check_branch
        %306 = sbr.rel (%p304) target = $region36
      $region35: #{elr_loss_forward.1} parent=27 // pred_region
        %s307 = smul.u32 2, %s15
      $region36: #{elr_loss_forward.1} parent=27 // pred_fallthru
        _
    $region28: #{elr_loss_forward.1} parent=5 // pred_fallthru
      _
    %p308 = scmp.le.s32.totalorder 2, %s10
    // Predicated region
    $region37: #{elr_loss_forward.1} parent=5 // pred_check
      %p309 = pneg %p308
    $region38: #{elr_loss_forward.1} parent=5 // pred_check_branch
      %311 = sbr.rel (%p309) target = $region40
    $region39: #{elr_loss_forward.1} parent=5 // pred_region
      %s312 = ssub.s32 %s10, 2
      // Predicated region
      $region41: #{elr_loss_forward.1} parent=39 // pred_check
        %p313 = pneg %p91
      $region42: #{elr_loss_forward.1} parent=39 // pred_check_branch
        %315 = sbr.rel (%p313) target = $region44
      $region43: #{elr_loss_forward.1} parent=39 // pred_region
        %s316 = smul.u32 2, %s16
        %p317 = scmp.lt.s32.totalorder %s316, 7
        %s318 = scalar_select %p317, %s316, 7
        %s319 = smul.addr %s318, 8
        %s320 = scalar_lea.vmem %s2, %s319
      $region44: #{elr_loss_forward.1} parent=39 // pred_fallthru
        _
      // Predicated region
      $region45: #{elr_loss_forward.1} parent=39 // pred_check
        %p321 = pneg %p117
      $region46: #{elr_loss_forward.1} parent=39 // pred_check_branch
        %323 = sbr.rel (%p321) target = $region48
      $region47: #{elr_loss_forward.1} parent=39 // pred_region
        %s324 = smul.u32 2, %s16
        %p325 = scmp.lt.s32.totalorder %s324, 7
        %s326 = scalar_select %p325, %s324, 7
        %s327 = smul.addr %s326, 8
        %s328 = scalar_lea.vmem %s3, %s327
      $region48: #{elr_loss_forward.1} parent=39 // pred_fallthru
        _
    $region40: #{elr_loss_forward.1} parent=5 // pred_fallthru
      _
  $region6: #{elr_loss_forward.1} parent=0 // loop_footer
    %s14 = sadd.s32 1, %s10
  $region7: #{elr_loss_forward.1} parent=0 // loop_footer_branch
    %9 = sbr.rel target = $region3
  $region8: #{elr_loss_forward.1} parent=0 // loop_exit
    _

</llo_original>
